<compile_context>
chip_gen: v5e
topology: v5e:2x2
jax: 0.10.0
libtpu: 0.0.40
codegen_flags: <defaults>
</compile_context>

<pallas_src>
import functools

import jax
import jax.numpy as jnp
from jax import lax
from jax.experimental import pallas as pl
from jax.experimental.pallas import tpu as pltpu


def _round_up(x: int, m: int) -> int:
    return ((x + m - 1) // m) * m


def _linear_kernel(x_ref, w_ref, b_ref, o_ref, acc_ref):
    # x_ref: (tm, tk) bf16     -- activations tile
    # w_ref: (tn, tk) bf16     -- weight tile, PyTorch (Out, In) layout
    # b_ref: (1,  tn) f32      -- bias tile
    # o_ref: (tm, tn) out dtype
    # acc_ref: (tm, tn) f32 VMEM accumulator (persists across the K axis)
    k = pl.program_id(2)

    @pl.when(k == 0)
    def _():
        acc_ref[...] = jnp.zeros_like(acc_ref)

    # NT matmul: contract last dim of x with last dim of w (w is (Out, In)).
    acc_ref[...] += lax.dot_general(
        x_ref[...], w_ref[...],
        dimension_numbers=(((1,), (1,)), ((), ())),
        preferred_element_type=jnp.float32,
    )

    @pl.when(k == pl.num_programs(2) - 1)
    def _():
        o_ref[...] = (acc_ref[...] + b_ref[...]).astype(o_ref.dtype)


@functools.partial(jax.jit, static_argnames=("tm", "tn", "tk"))
def linear_layer(x, weight, bias, *, tm=256, tn=256, tk=512):
    """y = x @ weight.T + bias.

    x:      (B, In)      float32 (or bf16)
    weight: (Out, In)    PyTorch nn.Linear layout (NOT transposed here)
    bias:   (Out,)       float32
    """
    B, In = x.shape
    Out, In_w = weight.shape
    assert In_w == In, "weight must be (Out, In)"
    out_dtype = x.dtype

    # Cap tiles at the (padded) problem size; respect TPU tiling:
    #   tm -> sublane axis (bf16 packs (16, 128)); tn, tk -> lane axes.
    tm = min(tm, _round_up(B, 16))
    tn = min(tn, _round_up(Out, 128))
    tk = min(tk, _round_up(In, 128))

    Mp = _round_up(B, tm)
    Np = _round_up(Out, tn)
    Kp = _round_up(In, tk)

    # Zero-pad (zeros along K contribute nothing; extra M/N rows are sliced off).
    x_p = jnp.pad(x.astype(jnp.bfloat16), ((0, Mp - B), (0, Kp - In)))
    w_p = jnp.pad(weight.astype(jnp.bfloat16), ((0, Np - Out), (0, Kp - In)))
    b_p = jnp.pad(bias.astype(jnp.float32), (0, Np - Out)).reshape(1, Np)

    grid = (Mp // tm, Np // tn, Kp // tk)

    out_itemsize = jnp.dtype(out_dtype).itemsize
    # VMEM: 2x double-buffered bf16 input blocks + bias + output + f32 acc.
    vmem_need = (2 * (tm * tk + tn * tk) * 2
                 + 2 * tn * 4
                 + 2 * tm * tn * out_itemsize
                 + tm * tn * 4)
    vmem_budget = min(max(2 * vmem_need, 16 * 1024 * 1024), 48 * 1024 * 1024)

    cost = pl.CostEstimate(
        flops=2 * Mp * Np * Kp,
        transcendentals=0,
        bytes_accessed=(Mp * Kp + Np * Kp) * 2 + Np * 4 + Mp * Np * out_itemsize,
    )

    out_p = pl.pallas_call(
        _linear_kernel,
        out_shape=jax.ShapeDtypeStruct((Mp, Np), out_dtype),
        grid=grid,
        in_specs=[
            pl.BlockSpec((tm, tk), lambda i, j, k: (i, k)),   # x
            pl.BlockSpec((tn, tk), lambda i, j, k: (j, k)),   # weight (Out, In)
            pl.BlockSpec((1, tn), lambda i, j, k: (0, j)),    # bias
        ],
        out_specs=pl.BlockSpec((tm, tn), lambda i, j, k: (i, j)),
        scratch_shapes=[pltpu.VMEM((tm, tn), jnp.float32)],
        compiler_params=pltpu.CompilerParams(
            dimension_semantics=("parallel", "parallel", "arbitrary"),
            vmem_limit_bytes=vmem_budget,
        ),
        cost_estimate=cost,
    )(x_p, w_p, b_p)

    return out_p[:B, :Out]


def _reference(x, weight, bias):
    # Reference with the same bf16 input quantization (f32 accumulation).
    xb = x.astype(jnp.bfloat16).astype(jnp.float32)
    wb = weight.astype(jnp.bfloat16).astype(jnp.float32)
    return xb @ wb.T + bias.astype(jnp.float32)


if __name__ == "__main__":
    key = jax.random.PRNGKey(0)

    # ---- Test 1: shapes implied by the module (small linear layer) ----
    batch, input_size, output_size = 8, 32, 16
    bias_const = 0.0  # LinearLayer(..., bias=0.0) -> bias initialized constant

    kx, kw, kx2, kw2, kb2 = jax.random.split(key, 5)
    x = jax.random.normal(kx, (batch, input_size), dtype=jnp.float32)
    weight = jax.random.normal(kw, (output_size, input_size),
                               dtype=jnp.float32) * (1.0 / input_size ** 0.5)
    bias = jnp.full((output_size,), bias_const, dtype=jnp.float32)

    out = jax.block_until_ready(linear_layer(x, weight, bias))
    ref = _reference(x, weight, bias)
    assert out.shape == (batch, output_size)
    assert jnp.allclose(out, ref, atol=2e-2, rtol=2e-2), \
        f"max err {jnp.max(jnp.abs(out - ref))}"

    # ---- Test 2: exercises multi-tile grid (M, N and K tiling + accumulator) ----
    b2, in2, out2 = 40, 640, 272
    x2 = jax.random.normal(kx2, (b2, in2), dtype=jnp.float32)
    w2 = jax.random.normal(kw2, (out2, in2), dtype=jnp.float32) * (1.0 / in2 ** 0.5)
    bi2 = jax.random.normal(kb2, (out2,), dtype=jnp.float32)

    o2 = jax.block_until_ready(linear_layer(x2, w2, bi2))
    r2 = _reference(x2, w2, bi2)
    assert o2.shape == (b2, out2)
    assert jnp.allclose(o2, r2, atol=2e-2, rtol=2e-2), \
        f"max err {jnp.max(jnp.abs(o2 - r2))}"

    print("KERNEL_OK")
</pallas_src>

<mosaic_0001>
module attributes {stable_mosaic.version = 11 : i64} {
  func.func @_linear_kernel(%arg0: i32, %arg1: i32, %arg2: i32, %arg3: memref<16x128xbf16, #tpu.memory_space<vmem>>, %arg4: memref<128x128xbf16, #tpu.memory_space<vmem>>, %arg5: memref<1x128xf32, #tpu.memory_space<vmem>>, %arg6: memref<16x128xf32, #tpu.memory_space<vmem>>, %arg7: memref<16x128xf32, #tpu.memory_space<vmem>>) attributes {dimension_semantics = [#tpu.dimension_semantics<parallel>, #tpu.dimension_semantics<parallel>, #tpu.dimension_semantics<arbitrary>], iteration_bounds = array<i64: 1, 1, 1>, scalar_prefetch = 0 : i64, scratch_operands = 1 : i64, tpu.core_type = #tpu.core_type<tc>, window_params = [{transform_indices = @transform_0, window_bounds = array<i64: 16, 128>}, {transform_indices = @transform_1, window_bounds = array<i64: 128, 128>}, {transform_indices = @transform_2, window_bounds = array<i64: 1, 128>}, {transform_indices = @transform_3, window_bounds = array<i64: 16, 128>}]} {
    %c0_i32 = arith.constant 0 : i32
    %0 = arith.cmpi eq, %arg2, %c0_i32 : i32
    %1 = arith.extui %0 : i1 to i32
    %c0_i32_0 = arith.constant 0 : i32
    %2 = arith.cmpi ne, %1, %c0_i32_0 : i32
    scf.if %2 {
      %cst_10 = arith.constant 0.000000e+00 : f32
      %12 = vector.broadcast %cst_10 : f32 to vector<16x128xf32>
      %c0_11 = arith.constant 0 : index
      %c0_12 = arith.constant 0 : index
      %13 = vector.load %arg7[%c0_11, %c0_12] : memref<16x128xf32, #tpu.memory_space<vmem>>, vector<16x128xf32>
      tpu.vector_store %arg7[%c0_11, %c0_12], %12 {strides = array<i32>} : memref<16x128xf32, #tpu.memory_space<vmem>>, vector<16x128xf32>,
    } else {
    }
    %c0 = arith.constant 0 : index
    %c0_1 = arith.constant 0 : index
    %3 = vector.load %arg7[%c0, %c0_1] : memref<16x128xf32, #tpu.memory_space<vmem>>, vector<16x128xf32>
    %c0_2 = arith.constant 0 : index
    %c0_3 = arith.constant 0 : index
    %4 = vector.load %arg3[%c0_2, %c0_3] : memref<16x128xbf16, #tpu.memory_space<vmem>>, vector<16x128xbf16>
    %c0_4 = arith.constant 0 : index
    %c0_5 = arith.constant 0 : index
    %5 = vector.load %arg4[%c0_4, %c0_5] : memref<128x128xbf16, #tpu.memory_space<vmem>>, vector<128x128xbf16>
    %cst = arith.constant dense<0.000000e+00> : vector<16x128xf32>
    %6 = tpu.matmul %4, %5, %cst {dimension_numbers = #tpu.dot_dimension_numbers<[1], [1], [0], [0], [0, 0, 1, 0], [], []>} : vector<16x128xbf16>, vector<128x128xbf16>, vector<16x128xf32> -> vector<16x128xf32>
    %7 = arith.addf %3, %6 : vector<16x128xf32>
    %c0_6 = arith.constant 0 : index
    %c0_7 = arith.constant 0 : index
    %8 = vector.load %arg7[%c0_6, %c0_7] : memref<16x128xf32, #tpu.memory_space<vmem>>, vector<16x128xf32>
    tpu.vector_store %arg7[%c0_6, %c0_7], %7 {strides = array<i32>} : memref<16x128xf32, #tpu.memory_space<vmem>>, vector<16x128xf32>,
    %c0_i32_8 = arith.constant 0 : i32
    %9 = arith.cmpi eq, %arg2, %c0_i32_8 : i32
    %10 = arith.extui %9 : i1 to i32
    %c0_i32_9 = arith.constant 0 : i32
    %11 = arith.cmpi ne, %10, %c0_i32_9 : i32
    scf.if %11 {
      %c0_10 = arith.constant 0 : index
      %c0_11 = arith.constant 0 : index
      %12 = vector.load %arg7[%c0_10, %c0_11] : memref<16x128xf32, #tpu.memory_space<vmem>>, vector<16x128xf32>
      %c0_12 = arith.constant 0 : index
      %c0_13 = arith.constant 0 : index
      %13 = vector.load %arg5[%c0_12, %c0_13] : memref<1x128xf32, #tpu.memory_space<vmem>>, vector<1x128xf32>
      %14 = vector.broadcast %13 : vector<1x128xf32> to vector<16x128xf32>
      %15 = arith.addf %12, %14 : vector<16x128xf32>
      %c0_14 = arith.constant 0 : index
      %c0_15 = arith.constant 0 : index
      %16 = vector.load %arg6[%c0_14, %c0_15] : memref<16x128xf32, #tpu.memory_space<vmem>>, vector<16x128xf32>
      tpu.vector_store %arg6[%c0_14, %c0_15], %15 {strides = array<i32>} : memref<16x128xf32, #tpu.memory_space<vmem>>, vector<16x128xf32>,
    } else {
    }
    return
  }
  func.func @transform_0(%arg0: i32, %arg1: i32, %arg2: i32) -> (i32, i32) {
    %c0_i32 = arith.constant 0 : i32
    return %arg0, %arg2 : i32, i32
  }
  func.func @transform_1(%arg0: i32, %arg1: i32, %arg2: i32) -> (i32, i32) {
    %c0_i32 = arith.constant 0 : i32
    return %arg1, %arg2 : i32, i32
  }
  func.func @transform_2(%arg0: i32, %arg1: i32, %arg2: i32) -> (i32, i32) {
    %c0_i32 = arith.constant 0 : i32
    %c0_i32_0 = arith.constant 0 : i32
    return %c0_i32, %arg1 : i32, i32
  }
  func.func @transform_3(%arg0: i32, %arg1: i32, %arg2: i32) -> (i32, i32) {
    %c0_i32 = arith.constant 0 : i32
    return %arg0, %arg1 : i32, i32
  }
}

</mosaic_0001>

<llo_original>
// kernel: linear_layer.1
$region0: #{linear_layer.1}
  #allocation0 [shape = 'u32[]', space=smem, size = 0x4, offset = 0x4, fixed_abs, tag = 'smem constant byte address 0x4 - core index']
  #allocation1 [shape = 'u32[72,128]{1,0:T(1,128)}', space=vmem, size = 0x9000, scoped, tag = 'internal scratch']
  #allocation2 [shape = 'f32[16,128]{1,0:T(8,128)}', space=vmem, size = 0x2000, scoped, tag = 'scratch operand']
  %s0 = inlined_call_operand.vmem [shape: bf16[16,128], index: 0, kind: input, shape index: {}]
  %s1 = inlined_call_operand.vmem [shape: bf16[128,128], index: 1, kind: input, shape index: {}]
  %s2 = inlined_call_operand.vmem [shape: f32[1,128], index: 2, kind: input, shape index: {}]
  %s3 = inlined_call_operand.vmem [shape: f32[16,128], index: 3, kind: output, shape index: {}]
  %s4 = sld [smem:[#allocation0]]
  $region30: #{linear_layer.1} parent=0
    _
  %s6 = ssub.s32 1, %s4
  %s7 = scalar_select 0, %s6, %s4
  // Predicated region
  $region2: #{linear_layer.1} parent=0 // pred_check
    _
  $region3: #{linear_layer.1} parent=0 // pred_check_branch
    %9 = sbr.rel (0) target = $region5
  $region4: #{linear_layer.1} parent=0 // pred_region
    _
  $region5: #{linear_layer.1} parent=0 // pred_fallthru
    _
  // Predicated region
  $region6: #{linear_layer.1} parent=0 // pred_check
    _
  $region7: #{linear_layer.1} parent=0 // pred_check_branch
    %11 = sbr.rel (0) target = $region9
  $region8: #{linear_layer.1} parent=0 // pred_region
    _
  $region9: #{linear_layer.1} parent=0 // pred_fallthru
    _
  // Predicated region
  $region10: #{linear_layer.1} parent=0 // pred_check
    _
  $region11: #{linear_layer.1} parent=0 // pred_check_branch
    %13 = sbr.rel (0) target = $region13
  $region12: #{linear_layer.1} parent=0 // pred_region
    _
  $region13: #{linear_layer.1} parent=0 // pred_fallthru
    _
  %p14 = scmp.eq.s32.totalorder 0, 0
  // Predicated region
  $region14: #{linear_layer.1} parent=0 // pred_check
    %p15 = pneg %p14
  $region15: #{linear_layer.1} parent=0 // pred_check_branch
    %17 = sbr.rel (%p15) target = $region17
  $region16: #{linear_layer.1} parent=0 // pred_region
    %18 = vst [vmem:[#allocation2] sm:$0xff] 0.0
    %19 = vst [vmem:[#allocation2 + $0x8] sm:$0xff] 0.0
  $region17: #{linear_layer.1} parent=0 // pred_fallthru
    _
  %v20 = vld [vmem:[#allocation2] sm:$0xff]
  %v21 = vld [vmem:[#allocation2 + $0x8] sm:$0xff]
  %v22 = vld [vmem:[%s0] sm:$0xf]
  %v23 = vld [vmem:[%s0 + $0x4] sm:$0xf]
  %v24 = vld [vmem:[%s1] sm:$0xf]
  %v25 = vld [vmem:[%s1 + $0x4] sm:$0xf]
  %v26 = vld [vmem:[%s1 + $0x8] sm:$0xf]
  %v27 = vld [vmem:[%s1 + $0xc] sm:$0xf]
  %v28 = vld [vmem:[%s1 + $0x10] sm:$0xf]
  %v29 = vld [vmem:[%s1 + $0x14] sm:$0xf]
  %v30 = vld [vmem:[%s1 + $0x18] sm:$0xf]
  %v31 = vld [vmem:[%s1 + $0x1c] sm:$0xf]
  %v32 = vld [vmem:[%s1 + $0x20] sm:$0xf]
  %v33 = vld [vmem:[%s1 + $0x24] sm:$0xf]
  %v34 = vld [vmem:[%s1 + $0x28] sm:$0xf]
  %v35 = vld [vmem:[%s1 + $0x2c] sm:$0xf]
  %v36 = vld [vmem:[%s1 + $0x30] sm:$0xf]
  %v37 = vld [vmem:[%s1 + $0x34] sm:$0xf]
  %v38 = vld [vmem:[%s1 + $0x38] sm:$0xf]
  %v39 = vld [vmem:[%s1 + $0x3c] sm:$0xf]
  %v42 = vunpack.c.l.b16 %v22
  %v43 = vunpack.c.l.b16 %v23
  %v44 = vpack.c.b16 %v43, %v42
  %v62 = vunpack.c.l.b16 %v24
  %v63 = vunpack.c.l.b16 %v25
  %v64 = vunpack.c.l.b16 %v26
  %v65 = vunpack.c.l.b16 %v27
  %v66 = vunpack.c.l.b16 %v28
  %v67 = vunpack.c.l.b16 %v29
  %v68 = vunpack.c.l.b16 %v30
  %v69 = vunpack.c.l.b16 %v31
  %v70 = vunpack.c.l.b16 %v32
  %v71 = vunpack.c.l.b16 %v33
  %v72 = vunpack.c.l.b16 %v34
  %v73 = vunpack.c.l.b16 %v35
  %v74 = vunpack.c.l.b16 %v36
  %v75 = vunpack.c.l.b16 %v37
  %v76 = vunpack.c.l.b16 %v38
  %v77 = vunpack.c.l.b16 %v39
  %v78 = vpack.c.b16 %v63, %v62
  %v79 = vpack.c.b16 %v65, %v64
  %v80 = vpack.c.b16 %v67, %v66
  %v81 = vpack.c.b16 %v69, %v68
  %v82 = vpack.c.b16 %v71, %v70
  %v83 = vpack.c.b16 %v73, %v72
  %v84 = vpack.c.b16 %v75, %v74
  %v85 = vpack.c.b16 %v77, %v76
  %94 = vmatpush.bf16.xpose.msra.mxu0 %v85
  %95 = vmatpush.bf16.xpose.msra.mxu0 %v84
  %96 = vmatpush.bf16.xpose.msra.mxu0 %v83
  %97 = vmatpush.bf16.xpose.msra.mxu0 %v82
  %98 = vmatpush.bf16.xpose.msra.mxu0 %v81
  %99 = vmatpush.bf16.xpose.msra.mxu0 %v80
  %100 = vmatpush.bf16.xpose.msra.mxu0 %v79
  %101 = vmatpush.bf16.xpose.msra.mxu0 %v78
  %102 = vmatmul.bf16.gmra.mxu0 %v44
  %v103 = vpop.f32.mrf.mxu0
  %v104 = vadd.f32 0.0, %v103
  %v105 = vpop.f32.mrf.mxu0
  %v106 = vadd.f32 0.0, %v105
  %107 = vdwg.mxu0
  %v108 = vadd.f32 %v20, %v104
  %v109 = vadd.f32 %v21, %v106
  %110 = vst [vmem:[#allocation2] sm:$0xff] %v108
  %111 = vst [vmem:[#allocation2 + $0x8] sm:$0xff] %v109
  // Predicated region
  $region18: #{linear_layer.1} parent=0 // pred_check
    %p112 = pneg %p14
  $region19: #{linear_layer.1} parent=0 // pred_check_branch
    %114 = sbr.rel (%p112) target = $region21
  $region20: #{linear_layer.1} parent=0 // pred_region
    %v115 = vld [vmem:[#allocation2] sm:$0xff]
    %v116 = vld [vmem:[#allocation2 + $0x8] sm:$0xff]
    %v117 = vld [vmem:[%s2] sm:$0x1]
    %v119 = vperm.slane %v117, 0
    %v121 = vadd.f32 %v115, %v119
    %v122 = vadd.f32 %v116, %v119
    %123 = vst [vmem:[%s3] sm:$0xff] %v121
    %124 = vst [vmem:[%s3 + $0x8] sm:$0xff] %v122
  $region21: #{linear_layer.1} parent=0 // pred_fallthru
    _
  // Predicated region
  $region22: #{linear_layer.1} parent=0 // pred_check
    _
  $region23: #{linear_layer.1} parent=0 // pred_check_branch
    %126 = sbr.rel (0) target = $region25
  $region24: #{linear_layer.1} parent=0 // pred_region
    _
  $region25: #{linear_layer.1} parent=0 // pred_fallthru
    _
  // Predicated region
  $region26: #{linear_layer.1} parent=0 // pred_check
    _
  $region27: #{linear_layer.1} parent=0 // pred_check_branch
    %128 = sbr.rel (0) target = $region29
  $region28: #{linear_layer.1} parent=0 // pred_region
    _
  $region29: #{linear_layer.1} parent=0 // pred_fallthru
    _

</llo_original>
